<compile_context>
chip_gen: v7x
topology: tpu7x:2x2x1
jax: 0.10.0
libtpu: 0.0.40
codegen_flags: <defaults>
</compile_context>

<pallas_src>
import math

import jax
import jax.numpy as jnp
import numpy as np
from jax.experimental import pallas as pl
from jax.experimental.pallas import tpu as pltpu


def _round_up(n, m):
    return ((n + m - 1) // m) * m


def make_pseudolabel_kernel(*, n_filters, n_k_classes, koff, c_pad, vocab_pad,
                            seq_len, seq_pad, misc_idx, threshold, upperbound):
    """Fused per-batch-tile kernel (all hyper-params static, captured by closure)."""
    inv_s = 1.0 / float(seq_len)
    inv_span = 1.0 / (float(upperbound) - float(threshold))
    neg_inv_log_k = -1.0 / math.log(float(n_k_classes))
    neg_big = -1e30

    def kernel(ids_ref, table_ref, w_ref, b_ref, qk_ref):
        ids = ids_ref[...]                                   # [rows, 1] int32
        rows = ids.shape[0]
        tb = rows // seq_pad

        # --- in-kernel embedding gather: one_hot(ids) @ table on the MXU.
        # Pad token (id == vocab) maps to an all-zero table row, so padded
        # sequence / batch rows contribute exactly 0 downstream.
        viota = jax.lax.broadcasted_iota(jnp.int32, (rows, vocab_pad), 1)
        onehot = (ids == viota).astype(jnp.bfloat16)          # exact 0/1
        emb = jnp.dot(onehot, table_ref[...],
                      preferred_element_type=jnp.float32).astype(jnp.bfloat16)

        # --- one fused MXU projection: all seed "convs" + k_model linear at once.
        pre = jnp.dot(emb, w_ref[...], preferred_element_type=jnp.float32)
        pre3 = pre.reshape(tb, seq_pad, c_pad)                # [tb, Sp, c_pad] f32

        b = b_ref[...]                                        # [1, c_pad] f32
        b3 = b.reshape(1, 1, c_pad)
        col3 = jax.lax.broadcasted_iota(jnp.int32, (1, 1, c_pad), 2)
        seed3 = jnp.logical_and(col3 <= n_filters, col3 != misc_idx)

        # stage 1: per-token seed scores, ReLU, max over seed lanes
        # (masked lanes are 0 and real ReLU scores are >= 0, so the max matches
        #  F.max_pool1d over the F filters exactly).
        act = jnp.where(seed3, jnp.maximum(pre3 + b3, 0.0), 0.0)
        w_tok = jnp.max(act, axis=2, keepdims=True)           # [tb, Sp, 1]

        # single fused sequence reduction:
        #   seed lanes: sum_s(w_s * pre_s)/S  == sen_embedded @ seed_W (linearity)
        #   k lanes   : sum_s(pre_s)/S        == mean(emb) @ k_W       (linearity)
        scaled = jnp.where(seed3, pre3 * w_tok, pre3)
        red = jnp.sum(scaled, axis=1) * inv_s                 # [tb, c_pad]

        col = jax.lax.broadcasted_iota(jnp.int32, (1, c_pad), 1)
        seed_m = jnp.logical_and(col <= n_filters, col != misc_idx)
        k_m = jnp.logical_and(col >= koff, col < koff + n_k_classes)

        # q = softmax(relu(sen @ W + b)) over the F seed lanes
        lq = jnp.where(seed_m, jnp.maximum(red + b, 0.0), neg_big)
        lq = lq - jnp.max(lq, axis=1, keepdims=True)
        eq = jnp.where(seed_m, jnp.exp(lq), 0.0)
        q = eq * pl.reciprocal(jnp.sum(eq, axis=1, keepdims=True), approx=True)

        # k_model stand-in: softmax(mean(emb) @ k_W + k_b) over the K lanes.
        # TODO(synk): k_model is an external pretrained classifier in the original
        # module; this is a deterministic mean-pool + linear stand-in.
        lk = jnp.where(k_m, red + b, neg_big)
        lk = lk - jnp.max(lk, axis=1, keepdims=True)
        ek = jnp.where(k_m, jnp.exp(lk), 0.0)
        pred = ek * pl.reciprocal(jnp.sum(ek, axis=1, keepdims=True), approx=True)

        # get_hnorm: normalized entropy with safe x*log(x) (0 -> 0)
        plogp = jnp.where(pred > 0.0,
                          pred * jnp.log(jnp.maximum(pred, 1e-37)), 0.0)
        h = neg_inv_log_k * jnp.sum(plogp, axis=1, keepdims=True)   # [tb, 1]

        # get_q_null
        q_null = jnp.where(h >= threshold, (h - threshold) * inv_span, 0.0)

        # q_kplus: seed probabilities already sit at their final q_kplus lane
        # positions (weights pre-permuted); null class is a lane select; all
        # other lanes (k columns + padding) are exactly 0.
        qk_ref[...] = jnp.where(col == misc_idx, q_null, q * (1.0 - q_null))

    return kernel


def _pick_batch_tile(B, Sp, Vp, Ep, c_pad, batch_tile=None):
    """Generation-aware batch tile: derive tb from a VMEM budget that includes the
    post-matmul f32 intermediates, then clamp for megacore / batch size."""
    phys = 64 << 20                              # conservative default (v7x physical VMEM)
    try:
        phys = int(getattr(pltpu.get_tpu_info(), "vmem_capacity_bytes", phys))
    except Exception:
        pass
    budget = int(min(phys * 0.6, 96 << 20))      # ~38 MiB on v7x, ~76 MiB on v5e/v6e

    # resident / double-buffered parameter blocks + compiler slack
    fixed = 2 * (Vp * Ep * 2 + Ep * c_pad * 2 + c_pad * 4) + (4 << 20)
    # per-batch-row bytes: ids tile (lane-padded, x2 buffers), one-hot (bf16),
    # emb (f32 matmul result + bf16 copy), pre/act/scaled f32 intermediates,
    # plus the double-buffered output row.
    per_row = Sp * (2 * 128 * 4 + 2 * Vp + 6 * Ep + 14 * c_pad) + 2 * 4 * c_pad

    tb = max(8, ((budget - fixed) // max(per_row, 1)) // 8 * 8)
    rows_cap = 2048                               # keep MXU/VPU intermediates modest
    if Sp <= rows_cap:
        tb = min(tb, max(8, (rows_cap // Sp) // 8 * 8))
    else:
        tb = 8
    tb = min(tb, _round_up(B, 8))                 # never bigger than the (padded) batch
    if B > 8:                                     # keep >= 2 grid steps for v7x megacore
        tb = min(tb, _round_up((B + 1) // 2, 8))
    if batch_tile is not None:
        tb = max(8, (int(batch_tile) // 8) * 8)
    return max(tb, 8), budget


def pseudolabel_plus(text, emb_table, seed_W, seed_b, k_W, k_b,
                     threshold, upperbound, misc_idx, *, batch_tile=None):
    """text: [S, B] int32 token ids (torchtext [seq, batch] convention)."""
    S, B = text.shape
    V, E = emb_table.shape
    F = int(seed_W.shape[1])
    K = int(k_W.shape[1])
    misc_idx = int(misc_idx)
    assert 0 <= misc_idx <= F, "misc label must be one of the F+1 output classes"

    Sp = _round_up(S, 8)
    Ep = _round_up(E, 128)
    Vp = _round_up(V + 1, 128)                    # +1 reserved zero-row pad token
    if F + 1 + K <= 128:                          # single 128-lane group
        koff = F + 1
        c_pad = 128
    else:
        koff = _round_up(F + 1, 128)
        c_pad = _round_up(koff + K, 128)

    # TODO(synk): for vocabularies too large for a VMEM-resident table, fall back
    # to a wrapper-side gather (or manual DMA row gather) instead of the in-kernel
    # one-hot lookup.
    assert Vp * Ep * 2 <= (16 << 20), "vocab too large for the VMEM-resident table path"

    # ---- parameter packing (tiny, host-side) --------------------------------
    # Seed columns placed directly at their q_kplus lane positions (misc_idx
    # reserved for the null class); k_model columns right after, same lane group.
    pos = np.arange(F)
    pos = np.where(pos < misc_idx, pos, pos + 1)
    w_np = np.zeros((Ep, c_pad), np.float32)
    w_np[:E, pos] = np.asarray(seed_W, np.float32)
    w_np[:E, koff:koff + K] = np.asarray(k_W, np.float32)
    b_np = np.zeros((1, c_pad), np.float32)
    b_np[0, pos] = np.asarray(seed_b, np.float32).reshape(F)
    b_np[0, koff:koff + K] = np.asarray(k_b, np.float32).reshape(K)
    t_np = np.zeros((Vp, Ep), np.float32)
    t_np[:V, :E] = np.asarray(emb_table, np.float32)

    w_all = jnp.asarray(w_np, jnp.bfloat16)       # bf16 matmul inputs, f32 accumulate
    table_p = jnp.asarray(t_np, jnp.bfloat16)
    b_all = jnp.asarray(b_np, jnp.float32)        # biases stay f32 (post-matmul math)

    # ---- batch tiling (no padded emb copy: pad the tiny int32 ids instead) --
    tb, budget = _pick_batch_tile(B, Sp, Vp, Ep, c_pad, batch_tile)
    Bp = _round_up(max(B, 1), tb)
    pad_id = V                                    # zero-embedding pad token
    ids = jnp.pad(text.T.astype(jnp.int32), ((0, Bp - B), (0, Sp - S)),
                  constant_values=pad_id)
    ids_flat = ids.reshape(Bp * Sp, 1)

    kernel = make_pseudolabel_kernel(
        n_filters=F, n_k_classes=K, koff=koff, c_pad=c_pad, vocab_pad=Vp,
        seq_len=S, seq_pad=Sp, misc_idx=misc_idx,
        threshold=float(threshold), upperbound=float(upperbound))

    vmem_limit = int(min(max(budget, 32 << 20), 100 << 20))

    qk_pad = pl.pallas_call(
        kernel,
        out_shape=jax.ShapeDtypeStruct((Bp, c_pad), jnp.float32),
        grid=(Bp // tb,),
        in_specs=[
            pl.BlockSpec((tb * Sp, 1), lambda i: (i, 0)),     # token ids (pipelined)
            pl.BlockSpec((Vp, Ep), lambda i: (0, 0)),         # embedding table (resident)
            pl.BlockSpec((Ep, c_pad), lambda i: (0, 0)),      # packed weights
            pl.BlockSpec((1, c_pad), lambda i: (0, 0)),       # packed biases
        ],
        out_specs=pl.BlockSpec((tb, c_pad), lambda i: (i, 0)),
        compiler_params=pltpu.CompilerParams(
            dimension_semantics=("parallel",),
            vmem_limit_bytes=vmem_limit),
    )(ids_flat, table_p, w_all, b_all)

    # ---- cross-batch normalisation (reduces over the tiled batch axis, so it
    # stays in the wrapper; tiny [B, F+1]).  NOTE: fs can be 0 for a column no
    # sample selects -> 0/0, exactly like the PyTorch original.
    q_kplus = qk_pad[:B, :F + 1]
    fs = jnp.sum(q_kplus, axis=0, keepdims=True)
    q2fs = (q_kplus * q_kplus) / fs
    p = q2fs / jnp.sum(q2fs, axis=1, keepdims=True)
    return p, q_kplus


def reference(text, emb_table, seed_W, seed_b, k_W, k_b,
              threshold, upperbound, misc_idx):
    """Pure-JAX reference mirroring the PyTorch forward (params quantised to bf16
    exactly as the kernel sees them, all math in f32)."""
    q16 = lambda a: a.astype(jnp.bfloat16).astype(jnp.float32)
    table, sW, kW = q16(emb_table), q16(seed_W), q16(k_W)
    emb = table[text.T]
    scores = jax.nn.relu(jnp.einsum("bse,ef->bsf", emb, sW) + seed_b[None])
    weights = jnp.max(scores, axis=2, keepdims=True)
    sen = jnp.mean(emb * weights, axis=1)
    q = jax.nn.softmax(jax.nn.relu(sen @ sW + seed_b), axis=1)
    pred = jax.nn.softmax(jnp.mean(emb, axis=1) @ kW + k_b, axis=1)
    K = pred.shape[1]
    plogp = jnp.where(pred > 0, pred * jnp.log(jnp.maximum(pred, 1e-37)), 0.0)
    h = -(1.0 / math.log(K)) * jnp.sum(plogp, axis=1, keepdims=True)
    q_null = jnp.where(h >= threshold, (h - threshold) / (upperbound - threshold), 0.0)
    q_k = q * (1.0 - q_null)
    q_kplus = jnp.concatenate([q_k[:, :misc_idx], q_null, q_k[:, misc_idx:]], axis=1)
    fs = jnp.sum(q_kplus, axis=0, keepdims=True)
    q2fs = q_kplus * q_kplus / fs
    p = q2fs / jnp.sum(q2fs, axis=1, keepdims=True)
    return p, q_kplus


if __name__ == "__main__":
    # Small, module-consistent shapes.
    vocab_size = 50
    E = 32          # embedding_dim
    F = 4           # n_filters (== number of seed-word classes)
    K = F + 1       # k_model output classes
    S = 8           # sequence length
    B = 2           # batch size
    misc_idx = 2    # LABEL_stoi['miscellaneous']
    threshold, upperbound = 0.1, 1.0

    key = jax.random.PRNGKey(0)
    k1, k2, k3, k4, k5, k6 = jax.random.split(key, 6)

    emb_table = jax.random.normal(k1, (vocab_size, E), jnp.float32)   # frozen nn.Embedding
    seed_W = jax.random.normal(k2, (E, F), jnp.float32) * 0.2          # seed words as conv weights
    seed_b = jax.random.normal(k3, (1, F), jnp.float32) * 0.01         # conv biases
    k_W = jax.random.normal(k4, (E, K), jnp.float32) * 0.5             # synthetic k_model linear
    k_b = jnp.zeros((1, K), jnp.float32)

    # Exercise both a single-step grid (B=2) and a multi-step, padded grid (B=20).
    for batch, kk in ((B, k5), (20, k6)):
        text = jax.random.randint(kk, (S, batch), 0, vocab_size, jnp.int32)
        p, q_kplus = pseudolabel_plus(text, emb_table, seed_W, seed_b, k_W, k_b,
                                      threshold, upperbound, misc_idx)
        jax.block_until_ready((p, q_kplus))

        p_ref, qk_ref = reference(text, emb_table, seed_W, seed_b, k_W, k_b,
                                  threshold, upperbound, misc_idx)
        assert p.shape == (batch, F + 1) and q_kplus.shape == (batch, F + 1)
        assert np.allclose(np.asarray(q_kplus), np.asarray(qk_ref),
                           rtol=5e-3, atol=2e-3), \
            np.max(np.abs(np.asarray(q_kplus) - np.asarray(qk_ref)))
        assert np.allclose(np.asarray(p), np.asarray(p_ref),
                           rtol=5e-3, atol=2e-3), \
            np.max(np.abs(np.asarray(p) - np.asarray(p_ref)))

    print("KERNEL_OK")
</pallas_src>

<mosaic_0001>
module attributes {stable_mosaic.version = 11 : i64} {
  func.func @kernel(%arg0: i32, %arg1: memref<64x1xi32, #tpu.memory_space<vmem>>, %arg2: memref<128x128xbf16, #tpu.memory_space<vmem>>, %arg3: memref<128x128xbf16, #tpu.memory_space<vmem>>, %arg4: memref<1x128xf32, #tpu.memory_space<vmem>>, %arg5: memref<8x128xf32, #tpu.memory_space<vmem>>) attributes {dimension_semantics = [#tpu.dimension_semantics<parallel>], iteration_bounds = array<i64: 1>, scalar_prefetch = 0 : i64, scratch_operands = 0 : i64, tpu.core_type = #tpu.core_type<tc>, window_params = [{transform_indices = @transform_0, window_bounds = array<i64: 64, 1>}, {pipeline_mode = #tpu.pipeline_mode<synchronous>, transform_indices = @transform_1, window_bounds = array<i64: 128, 128>}, {pipeline_mode = #tpu.pipeline_mode<synchronous>, transform_indices = @transform_2, window_bounds = array<i64: 128, 128>}, {pipeline_mode = #tpu.pipeline_mode<synchronous>, transform_indices = @transform_3, window_bounds = array<i64: 1, 128>}, {transform_indices = @transform_4, window_bounds = array<i64: 8, 128>}]} {
    %c0 = arith.constant 0 : index
    %c0_0 = arith.constant 0 : index
    %0 = vector.load %arg1[%c0, %c0_0] : memref<64x1xi32, #tpu.memory_space<vmem>>, vector<64x1xi32>
    %1 = tpu.iota {dimensions = array<i32: 1>} : vector<64x128xi32>
    %2 = vector.broadcast %0 : vector<64x1xi32> to vector<64x128xi32>
    %3 = arith.cmpi eq, %2, %1 : vector<64x128xi32>
    %4 = arith.extui %3 : vector<64x128xi1> to vector<64x128xi32>
    %5 = arith.sitofp %4 : vector<64x128xi32> to vector<64x128xf32>
    %6 = arith.truncf %5 : vector<64x128xf32> to vector<64x128xbf16>
    %c0_1 = arith.constant 0 : index
    %c0_2 = arith.constant 0 : index
    %7 = vector.load %arg2[%c0_1, %c0_2] : memref<128x128xbf16, #tpu.memory_space<vmem>>, vector<128x128xbf16>
    %cst = arith.constant dense<0.000000e+00> : vector<64x128xf32>
    %8 = tpu.matmul %6, %7, %cst {dimension_numbers = #tpu.dot_dimension_numbers<[1], [0], [0], [1], [0, 0, 1, 1], [], []>} : vector<64x128xbf16>, vector<128x128xbf16>, vector<64x128xf32> -> vector<64x128xf32>
    %9 = arith.truncf %8 : vector<64x128xf32> to vector<64x128xbf16>
    %c0_3 = arith.constant 0 : index
    %c0_4 = arith.constant 0 : index
    %10 = vector.load %arg3[%c0_3, %c0_4] : memref<128x128xbf16, #tpu.memory_space<vmem>>, vector<128x128xbf16>
    %cst_5 = arith.constant dense<0.000000e+00> : vector<64x128xf32>
    %11 = tpu.matmul %9, %10, %cst_5 {dimension_numbers = #tpu.dot_dimension_numbers<[1], [0], [0], [1], [0, 0, 1, 1], [], []>} : vector<64x128xbf16>, vector<128x128xbf16>, vector<64x128xf32> -> vector<64x128xf32>
    %12 = vector.shape_cast %11 : vector<64x128xf32> to vector<8x8x128xf32>
    %c0_6 = arith.constant 0 : index
    %c0_7 = arith.constant 0 : index
    %13 = vector.load %arg4[%c0_6, %c0_7] : memref<1x128xf32, #tpu.memory_space<vmem>>, vector<1x128xf32>
    %14 = vector.shape_cast %13 : vector<1x128xf32> to vector<1x1x128xf32>
    %15 = tpu.iota {dimensions = array<i32: 2>} : vector<1x1x128xi32>
    %c4_i32 = arith.constant 4 : i32
    %16 = vector.broadcast %c4_i32 : i32 to vector<1x1x128xi32>
    %17 = arith.cmpi sle, %15, %16 : vector<1x1x128xi32>
    %c2_i32 = arith.constant 2 : i32
    %18 = vector.broadcast %c2_i32 : i32 to vector<1x1x128xi32>
    %19 = arith.cmpi ne, %15, %18 : vector<1x1x128xi32>
    %20 = arith.andi %17, %19 : vector<1x1x128xi1>
    %21 = vector.broadcast %14 : vector<1x1x128xf32> to vector<8x8x128xf32>
    %22 = arith.addf %12, %21 : vector<8x8x128xf32>
    %cst_8 = arith.constant 0.000000e+00 : f32
    %23 = vector.broadcast %cst_8 : f32 to vector<8x8x128xf32>
    %24 = arith.maximumf %22, %23 : vector<8x8x128xf32>
    %cst_9 = arith.constant 0.000000e+00 : f32
    %25 = vector.shape_cast %20 : vector<1x1x128xi1> to vector<1x1x128xi1>
    %26 = vector.broadcast %25 : vector<1x1x128xi1> to vector<8x8x128xi1>
    %27 = vector.broadcast %cst_9 : f32 to vector<8x8x128xf32>
    %28 = arith.select %26, %24, %27 : vector<8x8x128xi1>, vector<8x8x128xf32>
    %cst_10 = arith.constant dense<0xFF800000> : vector<8x8xf32>
    %29 = vector.multi_reduction <maximumf>, %28, %cst_10 [2] : vector<8x8x128xf32> to vector<8x8xf32>
    %30 = vector.shape_cast %29 : vector<8x8xf32> to vector<8x8x1xf32>
    %31 = vector.broadcast %30 : vector<8x8x1xf32> to vector<8x8x128xf32>
    %32 = arith.mulf %12, %31 : vector<8x8x128xf32>
    %33 = vector.shape_cast %20 : vector<1x1x128xi1> to vector<1x1x128xi1>
    %34 = vector.broadcast %33 : vector<1x1x128xi1> to vector<8x8x128xi1>
    %35 = arith.select %34, %32, %12 : vector<8x8x128xi1>, vector<8x8x128xf32>
    %cst_11 = arith.constant dense<0.000000e+00> : vector<8x128xf32>
    %36 = vector.multi_reduction <add>, %35, %cst_11 [1] : vector<8x8x128xf32> to vector<8x128xf32>
    %cst_12 = arith.constant 1.250000e-01 : f32
    %37 = vector.broadcast %cst_12 : f32 to vector<8x128xf32>
    %38 = arith.mulf %36, %37 : vector<8x128xf32>
    %39 = tpu.iota {dimensions = array<i32: 1>} : vector<1x128xi32>
    %c4_i32_13 = arith.constant 4 : i32
    %40 = vector.broadcast %c4_i32_13 : i32 to vector<1x128xi32>
    %41 = arith.cmpi sle, %39, %40 : vector<1x128xi32>
    %c2_i32_14 = arith.constant 2 : i32
    %42 = vector.broadcast %c2_i32_14 : i32 to vector<1x128xi32>
    %43 = arith.cmpi ne, %39, %42 : vector<1x128xi32>
    %44 = arith.andi %41, %43 : vector<1x128xi1>
    %c5_i32 = arith.constant 5 : i32
    %45 = vector.broadcast %c5_i32 : i32 to vector<1x128xi32>
    %46 = arith.cmpi sge, %39, %45 : vector<1x128xi32>
    %c10_i32 = arith.constant 10 : i32
    %47 = vector.broadcast %c10_i32 : i32 to vector<1x128xi32>
    %48 = arith.cmpi slt, %39, %47 : vector<1x128xi32>
    %49 = arith.andi %46, %48 : vector<1x128xi1>
    %50 = vector.broadcast %13 : vector<1x128xf32> to vector<8x128xf32>
    %51 = arith.addf %38, %50 : vector<8x128xf32>
    %cst_15 = arith.constant 0.000000e+00 : f32
    %52 = vector.broadcast %cst_15 : f32 to vector<8x128xf32>
    %53 = arith.maximumf %51, %52 : vector<8x128xf32>
    %cst_16 = arith.constant -1.000000e+30 : f32
    %54 = vector.shape_cast %44 : vector<1x128xi1> to vector<1x128xi1>
    %55 = vector.broadcast %54 : vector<1x128xi1> to vector<8x128xi1>
    %56 = vector.broadcast %cst_16 : f32 to vector<8x128xf32>
    %57 = arith.select %55, %53, %56 : vector<8x128xi1>, vector<8x128xf32>
    %cst_17 = arith.constant dense<0xFF800000> : vector<8xf32>
    %58 = vector.multi_reduction <maximumf>, %57, %cst_17 [1] : vector<8x128xf32> to vector<8xf32>
    %59 = vector.shape_cast %58 : vector<8xf32> to vector<8x1xf32>
    %60 = vector.broadcast %59 : vector<8x1xf32> to vector<8x128xf32>
    %61 = arith.subf %57, %60 : vector<8x128xf32>
    %62 = math.exp %61 : vector<8x128xf32>
    %cst_18 = arith.constant 0.000000e+00 : f32
    %63 = vector.shape_cast %44 : vector<1x128xi1> to vector<1x128xi1>
    %64 = vector.broadcast %63 : vector<1x128xi1> to vector<8x128xi1>
    %65 = vector.broadcast %cst_18 : f32 to vector<8x128xf32>
    %66 = arith.select %64, %62, %65 : vector<8x128xi1>, vector<8x128xf32>
    %cst_19 = arith.constant dense<0.000000e+00> : vector<8xf32>
    %67 = vector.multi_reduction <add>, %66, %cst_19 [1] : vector<8x128xf32> to vector<8xf32>
    %68 = vector.shape_cast %67 : vector<8xf32> to vector<8x1xf32>
    %69 = tpu.reciprocal %68 {approx = true} : vector<8x1xf32> -> vector<8x1xf32>
    %70 = vector.broadcast %69 : vector<8x1xf32> to vector<8x128xf32>
    %71 = arith.mulf %66, %70 : vector<8x128xf32>
    %72 = vector.broadcast %13 : vector<1x128xf32> to vector<8x128xf32>
    %73 = arith.addf %38, %72 : vector<8x128xf32>
    %cst_20 = arith.constant -1.000000e+30 : f32
    %74 = vector.shape_cast %49 : vector<1x128xi1> to vector<1x128xi1>
    %75 = vector.broadcast %74 : vector<1x128xi1> to vector<8x128xi1>
    %76 = vector.broadcast %cst_20 : f32 to vector<8x128xf32>
    %77 = arith.select %75, %73, %76 : vector<8x128xi1>, vector<8x128xf32>
    %cst_21 = arith.constant dense<0xFF800000> : vector<8xf32>
    %78 = vector.multi_reduction <maximumf>, %77, %cst_21 [1] : vector<8x128xf32> to vector<8xf32>
    %79 = vector.shape_cast %78 : vector<8xf32> to vector<8x1xf32>
    %80 = vector.broadcast %79 : vector<8x1xf32> to vector<8x128xf32>
    %81 = arith.subf %77, %80 : vector<8x128xf32>
    %82 = math.exp %81 : vector<8x128xf32>
    %cst_22 = arith.constant 0.000000e+00 : f32
    %83 = vector.shape_cast %49 : vector<1x128xi1> to vector<1x128xi1>
    %84 = vector.broadcast %83 : vector<1x128xi1> to vector<8x128xi1>
    %85 = vector.broadcast %cst_22 : f32 to vector<8x128xf32>
    %86 = arith.select %84, %82, %85 : vector<8x128xi1>, vector<8x128xf32>
    %cst_23 = arith.constant dense<0.000000e+00> : vector<8xf32>
    %87 = vector.multi_reduction <add>, %86, %cst_23 [1] : vector<8x128xf32> to vector<8xf32>
    %88 = vector.shape_cast %87 : vector<8xf32> to vector<8x1xf32>
    %89 = tpu.reciprocal %88 {approx = true} : vector<8x1xf32> -> vector<8x1xf32>
    %90 = vector.broadcast %89 : vector<8x1xf32> to vector<8x128xf32>
    %91 = arith.mulf %86, %90 : vector<8x128xf32>
    %cst_24 = arith.constant 0.000000e+00 : f32
    %92 = vector.broadcast %cst_24 : f32 to vector<8x128xf32>
    %93 = arith.cmpf ogt, %91, %92 : vector<8x128xf32>
    %cst_25 = arith.constant 9.99999991E-38 : f32
    %94 = vector.broadcast %cst_25 : f32 to vector<8x128xf32>
    %95 = arith.maximumf %91, %94 : vector<8x128xf32>
    %96 = math.log %95 : vector<8x128xf32>
    %97 = arith.mulf %91, %96 : vector<8x128xf32>
    %cst_26 = arith.constant 0.000000e+00 : f32
    %98 = vector.broadcast %cst_26 : f32 to vector<8x128xf32>
    %99 = arith.select %93, %97, %98 : vector<8x128xi1>, vector<8x128xf32>
    %cst_27 = arith.constant dense<0.000000e+00> : vector<8xf32>
    %100 = vector.multi_reduction <add>, %99, %cst_27 [1] : vector<8x128xf32> to vector<8xf32>
    %101 = vector.shape_cast %100 : vector<8xf32> to vector<8x1xf32>
    %cst_28 = arith.constant -0.62133491 : f32
    %102 = vector.broadcast %cst_28 : f32 to vector<8x1xf32>
    %103 = arith.mulf %102, %101 : vector<8x1xf32>
    %cst_29 = arith.constant 1.000000e-01 : f32
    %104 = vector.broadcast %cst_29 : f32 to vector<8x1xf32>
    %105 = arith.cmpf oge, %103, %104 : vector<8x1xf32>
    %cst_30 = arith.constant 1.000000e-01 : f32
    %106 = vector.broadcast %cst_30 : f32 to vector<8x1xf32>
    %107 = arith.subf %103, %106 : vector<8x1xf32>
    %cst_31 = arith.constant 1.11111116 : f32
    %108 = vector.broadcast %cst_31 : f32 to vector<8x1xf32>
    %109 = arith.mulf %107, %108 : vector<8x1xf32>
    %cst_32 = arith.constant 0.000000e+00 : f32
    %110 = vector.broadcast %cst_32 : f32 to vector<8x1xf32>
    %111 = arith.select %105, %109, %110 : vector<8x1xi1>, vector<8x1xf32>
    %c2_i32_33 = arith.constant 2 : i32
    %112 = vector.broadcast %c2_i32_33 : i32 to vector<1x128xi32>
    %113 = arith.cmpi eq, %39, %112 : vector<1x128xi32>
    %cst_34 = arith.constant 1.000000e+00 : f32
    %114 = vector.broadcast %cst_34 : f32 to vector<8x1xf32>
    %115 = arith.subf %114, %111 : vector<8x1xf32>
    %116 = vector.broadcast %115 : vector<8x1xf32> to vector<8x128xf32>
    %117 = arith.mulf %71, %116 : vector<8x128xf32>
    %118 = vector.shape_cast %113 : vector<1x128xi1> to vector<1x128xi1>
    %119 = vector.broadcast %118 : vector<1x128xi1> to vector<8x128xi1>
    %120 = vector.shape_cast %111 : vector<8x1xf32> to vector<8x1xf32>
    %121 = vector.broadcast %120 : vector<8x1xf32> to vector<8x128xf32>
    %122 = arith.select %119, %121, %117 : vector<8x128xi1>, vector<8x128xf32>
    %c0_35 = arith.constant 0 : index
    %c0_36 = arith.constant 0 : index
    %123 = vector.load %arg5[%c0_35, %c0_36] : memref<8x128xf32, #tpu.memory_space<vmem>>, vector<8x128xf32>
    tpu.vector_store %arg5[%c0_35, %c0_36], %122 {strides = array<i32>} : memref<8x128xf32, #tpu.memory_space<vmem>>, vector<8x128xf32>,
    return
  }
  func.func @transform_0(%arg0: i32) -> (i32, i32) {
    %c0_i32 = arith.constant 0 : i32
    %c0_i32_0 = arith.constant 0 : i32
    return %arg0, %c0_i32 : i32, i32
  }
  func.func @transform_1(%arg0: i32) -> (i32, i32) {
    %c0_i32 = arith.constant 0 : i32
    %c0_i32_0 = arith.constant 0 : i32
    %c0_i32_1 = arith.constant 0 : i32
    return %c0_i32, %c0_i32_0 : i32, i32
  }
  func.func @transform_2(%arg0: i32) -> (i32, i32) {
    %c0_i32 = arith.constant 0 : i32
    %c0_i32_0 = arith.constant 0 : i32
    %c0_i32_1 = arith.constant 0 : i32
    return %c0_i32, %c0_i32_0 : i32, i32
  }
  func.func @transform_3(%arg0: i32) -> (i32, i32) {
    %c0_i32 = arith.constant 0 : i32
    %c0_i32_0 = arith.constant 0 : i32
    %c0_i32_1 = arith.constant 0 : i32
    return %c0_i32, %c0_i32_0 : i32, i32
  }
  func.func @transform_4(%arg0: i32) -> (i32, i32) {
    %c0_i32 = arith.constant 0 : i32
    %c0_i32_0 = arith.constant 0 : i32
    return %arg0, %c0_i32 : i32, i32
  }
}

</mosaic_0001>

<llo_original>
// kernel: tpu_custom_call.1
$region0: #{tpu_custom_call.1}
  #allocation0 [shape = 'u32[]', space=smem, size = 0x4, offset = 0x4, fixed_abs, tag = 'smem constant byte address 0x4 - core index']
  #allocation1 [shape = 'u32[144,128]{1,0:T(1,128)}', space=vmem, size = 0x12000, scoped, tag = 'internal scratch']
  %s0 = inlined_call_operand.vmem [shape: s32[64,1], index: 0, kind: input, shape index: {}]
  %s1 = inlined_call_operand.vmem [shape: bf16[128,128], index: 1, kind: input, shape index: {}]
  %s2 = inlined_call_operand.hbm [shape: bf16[128,128], index: 2, kind: input, shape index: {}]
  %s3 = inlined_call_operand.vmem [shape: f32[1,128], index: 3, kind: input, shape index: {}]
  %s4 = inlined_call_operand.hbm [shape: f32[8,128], index: 4, kind: output, shape index: {}]
  %s5 = sld [smem:[#allocation0]]
  $region30: #{tpu_custom_call.1} parent=0
    _
  %s7 = ssub.s32 1, %s5
  %s8 = scalar_select 0, %s7, %s5
  $region1: #{tpu_custom_call.1} parent=0
    #allocation2 [shape = 'u8[32768]{0}', space=vmem, size = 0x8000, scoped, tag = 'input window, operand 2, single buffered']
    #allocation3 [shape = 's32[1]{0}', space=sflag, size = 0x4, scoped, tag = 'scoped memory for tpu_custom_call.1']
    #allocation4 [shape = 's32[1]{0}', space=sflag, size = 0x4, scoped, tag = 'scoped memory for tpu_custom_call.1']
    #allocation5 [shape = 'u8[4096]{0}', space=vmem, size = 0x1000, scoped, tag = 'output window, operand 0, single buffered']
    %9 = vsyncpa [#allocation3], 0
    %10 = vsyncpa [#allocation4], 0
    // Predicated region
    $region2: #{tpu_custom_call.1} parent=1 // pred_check
      _
    $region3: #{tpu_custom_call.1} parent=1 // pred_check_branch
      %12 = sbr.rel (0) target = $region5
    $region4: #{tpu_custom_call.1} parent=1 // pred_region
      _
    $region5: #{tpu_custom_call.1} parent=1 // pred_fallthru
      _
    // Predicated region
    $region6: #{tpu_custom_call.1} parent=1 // pred_check
      _
    $region7: #{tpu_custom_call.1} parent=1 // pred_check_branch
      %14 = sbr.rel (0) target = $region9
    $region8: #{tpu_custom_call.1} parent=1 // pred_region
      _
    $region9: #{tpu_custom_call.1} parent=1 // pred_fallthru
      _
    // Predicated region
    $region10: #{tpu_custom_call.1} parent=1 // pred_check
      _
    $region11: #{tpu_custom_call.1} parent=1 // pred_check_branch
      %16 = sbr.rel (0) target = $region13
    $region12: #{tpu_custom_call.1} parent=1 // pred_region
      %s18 = ssub.s32 1024, 1024
      %19 = vsyncadd [#allocation3], %s18
      %s20 = sshll.u32 [#allocation2], 4
      %s21 = int_to_ptr.vmem [resolvable:$true] %s20
      %26 = dma.hbm_to_vmem [thread:$0]  %s2, 1024, %s21, [#allocation3], 64, 64, 4
    $region13: #{tpu_custom_call.1} parent=1 // pred_fallthru
      _
    // Predicated region
    $region14: #{tpu_custom_call.1} parent=1 // pred_check
      _
    $region15: #{tpu_custom_call.1} parent=1 // pred_check_branch
      %28 = sbr.rel (0) target = $region17
    $region16: #{tpu_custom_call.1} parent=1 // pred_region
      _
    $region17: #{tpu_custom_call.1} parent=1 // pred_fallthru
      _
    // Predicated region
    $region18: #{tpu_custom_call.1} parent=1 // pred_check
      _
    $region19: #{tpu_custom_call.1} parent=1 // pred_check_branch
      %30 = sbr.rel (0) target = $region21
    $region20: #{tpu_custom_call.1} parent=1 // pred_region
      %31 = dma.done [#allocation3], 1024
    $region21: #{tpu_custom_call.1} parent=1 // pred_fallthru
      _
    %v33 = vld [vmem:[%s0] sm:$0xff]
    %v34 = vld [vmem:[%s0 + $0x8] sm:$0xff]
    %v35 = vld [vmem:[%s0 + $0x10] sm:$0xff]
    %v36 = vld [vmem:[%s0 + $0x18] sm:$0xff]
    %v37 = vld [vmem:[%s0 + $0x20] sm:$0xff]
    %v38 = vld [vmem:[%s0 + $0x28] sm:$0xff]
    %v39 = vld [vmem:[%s0 + $0x30] sm:$0xff]
    %v40 = vld [vmem:[%s0 + $0x38] sm:$0xff]
    %v41 = vlaneseq
    %v42 = vand.u32 %v41, 127
    %43 = vset.pattern.permute.xlu0 0
    %44 = vperm.xlu0 %43, %v33
    %v45 = vpop.permute.xlu0 %44
    %46 = vset.pattern.permute.xlu0 0
    %47 = vperm.xlu0 %46, %v34
    %v48 = vpop.permute.xlu0 %47
    %49 = vset.pattern.permute.xlu0 0
    %50 = vperm.xlu0 %49, %v35
    %v51 = vpop.permute.xlu0 %50
    %52 = vset.pattern.permute.xlu0 0
    %53 = vperm.xlu0 %52, %v36
    %v54 = vpop.permute.xlu0 %53
    %55 = vset.pattern.permute.xlu0 0
    %56 = vperm.xlu0 %55, %v37
    %v57 = vpop.permute.xlu0 %56
    %58 = vset.pattern.permute.xlu0 0
    %59 = vperm.xlu0 %58, %v38
    %v60 = vpop.permute.xlu0 %59
    %61 = vset.pattern.permute.xlu0 0
    %62 = vperm.xlu0 %61, %v39
    %v63 = vpop.permute.xlu0 %62
    %64 = vset.pattern.permute.xlu0 0
    %65 = vperm.xlu0 %64, %v40
    %v66 = vpop.permute.xlu0 %65
    %vm67 = vcmp.eq.s32.totalorder %v45, %v42
    %vm68 = vcmp.eq.s32.totalorder %v48, %v42
    %vm69 = vcmp.eq.s32.totalorder %v51, %v42
    %vm70 = vcmp.eq.s32.totalorder %v54, %v42
    %vm71 = vcmp.eq.s32.totalorder %v57, %v42
    %vm72 = vcmp.eq.s32.totalorder %v60, %v42
    %vm73 = vcmp.eq.s32.totalorder %v63, %v42
    %vm74 = vcmp.eq.s32.totalorder %v66, %v42
    %v75 = vsel %vm67, 1, 0
    %v76 = vsel %vm68, 1, 0
    %v77 = vsel %vm69, 1, 0
    %v78 = vsel %vm70, 1, 0
    %v79 = vsel %vm71, 1, 0
    %v80 = vsel %vm72, 1, 0
    %v81 = vsel %vm73, 1, 0
    %v82 = vsel %vm74, 1, 0
    %v83 = vcvt.s32.f32 %v75
    %v84 = vcvt.s32.f32 %v76
    %v85 = vcvt.s32.f32 %v77
    %v86 = vcvt.s32.f32 %v78
    %v87 = vcvt.s32.f32 %v79
    %v88 = vcvt.s32.f32 %v80
    %v89 = vcvt.s32.f32 %v81
    %v90 = vcvt.s32.f32 %v82
    %v91 = vpack.c.bf16 %v84, %v83
    %v92 = vpack.c.bf16 %v86, %v85
    %v93 = vpack.c.bf16 %v88, %v87
    %v94 = vpack.c.bf16 %v90, %v89
    %v95 = vld [vmem:[%s1] sm:$0xf]
    %v96 = vld [vmem:[%s1 + $0x4] sm:$0xf]
    %v97 = vld [vmem:[%s1 + $0x8] sm:$0xf]
    %v98 = vld [vmem:[%s1 + $0xc] sm:$0xf]
    %v99 = vld [vmem:[%s1 + $0x10] sm:$0xf]
    %v100 = vld [vmem:[%s1 + $0x14] sm:$0xf]
    %v101 = vld [vmem:[%s1 + $0x18] sm:$0xf]
    %v102 = vld [vmem:[%s1 + $0x1c] sm:$0xf]
    %v103 = vld [vmem:[%s1 + $0x20] sm:$0xf]
    %v104 = vld [vmem:[%s1 + $0x24] sm:$0xf]
    %v105 = vld [vmem:[%s1 + $0x28] sm:$0xf]
    %v106 = vld [vmem:[%s1 + $0x2c] sm:$0xf]
    %v107 = vld [vmem:[%s1 + $0x30] sm:$0xf]
    %v108 = vld [vmem:[%s1 + $0x34] sm:$0xf]
    %v109 = vld [vmem:[%s1 + $0x38] sm:$0xf]
    %v110 = vld [vmem:[%s1 + $0x3c] sm:$0xf]
    %v127 = vunpack.c.l.b16 %v95
    %v128 = vunpack.c.l.b16 %v96
    %v129 = vunpack.c.l.b16 %v97
    %v130 = vunpack.c.l.b16 %v98
    %v131 = vunpack.c.l.b16 %v99
    %v132 = vunpack.c.l.b16 %v100
    %v133 = vunpack.c.l.b16 %v101
    %v134 = vunpack.c.l.b16 %v102
    %v135 = vunpack.c.l.b16 %v103
    %v136 = vunpack.c.l.b16 %v104
    %v137 = vunpack.c.l.b16 %v105
    %v138 = vunpack.c.l.b16 %v106
    %v139 = vunpack.c.l.b16 %v107
    %v140 = vunpack.c.l.b16 %v108
    %v141 = vunpack.c.l.b16 %v109
    %v142 = vunpack.c.l.b16 %v110
    %v143 = vpack.c.b16 %v128, %v127
    %v144 = vpack.c.b16 %v130, %v129
    %v145 = vpack.c.b16 %v132, %v131
    %v146 = vpack.c.b16 %v134, %v133
    %v147 = vpack.c.b16 %v136, %v135
    %v148 = vpack.c.b16 %v138, %v137
    %v149 = vpack.c.b16 %v140, %v139
    %v150 = vpack.c.b16 %v142, %v141
    %159 = vmatprep.subr.bf16.mxu0 0
    %160 = vmatpush1.bf16.msra.mxu0 %v143
    %161 = vmatprep.subr.bf16.mxu0 0
    %162 = vmatpush1.bf16.msra.mxu0 %v144
    %163 = vmatprep.subr.bf16.mxu0 0
    %164 = vmatpush1.bf16.msra.mxu0 %v145
    %165 = vmatprep.subr.bf16.mxu0 0
    %166 = vmatpush1.bf16.msra.mxu0 %v146
    %167 = vmatprep.subr.bf16.mxu0 0
    %168 = vmatpush1.bf16.msra.mxu0 %v147
    %169 = vmatprep.subr.bf16.mxu0 0
    %170 = vmatpush1.bf16.msra.mxu0 %v148
    %171 = vmatprep.subr.bf16.mxu0 0
    %172 = vmatpush1.bf16.msra.mxu0 %v149
    %173 = vmatprep.subr.bf16.mxu0 0
    %174 = vmatpush1.bf16.msra.mxu0 %v150
    %175 = vmatprep.subr.bf16.mxu0 0
    %176 = vmatpush1.bf16.msra.mxu0 0
    %177 = vmatprep.subr.bf16.mxu0 0
    %178 = vmatpush1.bf16.msra.mxu0 0
    %179 = vmatprep.subr.bf16.mxu0 0
    %180 = vmatpush1.bf16.msra.mxu0 0
    %181 = vmatprep.subr.bf16.mxu0 0
    %182 = vmatpush1.bf16.msra.mxu0 0
    %183 = vmatprep.subr.bf16.mxu0 0
    %184 = vmatpush1.bf16.msra.mxu0 0
    %185 = vmatprep.subr.bf16.mxu0 0
    %186 = vmatpush1.bf16.msra.mxu0 0
    %187 = vmatprep.subr.bf16.mxu0 0
    %188 = vmatpush1.bf16.msra.mxu0 0
    %189 = vmatprep.subr.bf16.mxu0 0
    %190 = vmatpush1.bf16.msra.mxu0 0
    %191 = vmatprep.mubr.bf16.mxu0 0
    %192 = vmatmul.mubr.bf16.gmra.mrb[0].mxu0 %v91
    %v193 = vpop.f32.mrb[0].mxu0
    %v194 = vadd.f32 0.0, %v193
    %v195 = vpop.f32.mrb[0].mxu0
    %v196 = vpop.f32.mrb[0].mxu0
    %v197 = vadd.f32 0.0, %v196
    %v198 = vpop.f32.mrb[0].mxu0
    %199 = vmatprep.mubr.bf16.mxu0 0
    %200 = vmatmul.mubr.bf16.gmra.mrb[0].mxu0 %v92
    %v201 = vpop.f32.mrb[0].mxu0
    %v202 = vadd.f32 0.0, %v201
    %v203 = vpop.f32.mrb[0].mxu0
    %v204 = vpop.f32.mrb[0].mxu0
    %v205 = vadd.f32 0.0, %v204
    %v206 = vpop.f32.mrb[0].mxu0
    %207 = vmatprep.mubr.bf16.mxu0 0
    %208 = vmatmul.mubr.bf16.gmra.mrb[0].mxu0 %v93
    %v209 = vpop.f32.mrb[0].mxu0
    %v210 = vadd.f32 0.0, %v209
    %v211 = vpop.f32.mrb[0].mxu0
    %v212 = vpop.f32.mrb[0].mxu0
    %v213 = vadd.f32 0.0, %v212
    %v214 = vpop.f32.mrb[0].mxu0
    %215 = vmatprep.mubr.bf16.mxu0 0
    %216 = vmatmul.mubr.bf16.gmra.mrb[0].mxu0 %v94
    %v217 = vpop.f32.mrb[0].mxu0
    %v218 = vadd.f32 0.0, %v217
    %v219 = vpop.f32.mrb[0].mxu0
    %v220 = vpop.f32.mrb[0].mxu0
    %v221 = vadd.f32 0.0, %v220
    %v222 = vpop.f32.mrb[0].mxu0
    %223 = vdwg.mxu0
    %v224 = vpack.c.bf16 %v197, %v194
    %v225 = vpack.c.bf16 %v205, %v202
    %v226 = vpack.c.bf16 %v213, %v210
    %v227 = vpack.c.bf16 %v221, %v218
    %v228 = vld [vmem:[#allocation2] sm:$0xf]
    %v229 = vld [vmem:[#allocation2 + $0x4] sm:$0xf]
    %v230 = vld [vmem:[#allocation2 + $0x8] sm:$0xf]
    %v231 = vld [vmem:[#allocation2 + $0xc] sm:$0xf]
    %v232 = vld [vmem:[#allocation2 + $0x10] sm:$0xf]
    %v233 = vld [vmem:[#allocation2 + $0x14] sm:$0xf]
    %v234 = vld [vmem:[#allocation2 + $0x18] sm:$0xf]
    %v235 = vld [vmem:[#allocation2 + $0x1c] sm:$0xf]
    %v236 = vld [vmem:[#allocation2 + $0x20] sm:$0xf]
    %v237 = vld [vmem:[#allocation2 + $0x24] sm:$0xf]
    %v238 = vld [vmem:[#allocation2 + $0x28] sm:$0xf]
    %v239 = vld [vmem:[#allocation2 + $0x2c] sm:$0xf]
    %v240 = vld [vmem:[#allocation2 + $0x30] sm:$0xf]
    %v241 = vld [vmem:[#allocation2 + $0x34] sm:$0xf]
    %v242 = vld [vmem:[#allocation2 + $0x38] sm:$0xf]
    %v243 = vld [vmem:[#allocation2 + $0x3c] sm:$0xf]
    %v260 = vunpack.c.l.b16 %v228
    %v261 = vunpack.c.l.b16 %v229
    %v262 = vunpack.c.l.b16 %v230
    %v263 = vunpack.c.l.b16 %v231
    %v264 = vunpack.c.l.b16 %v232
    %v265 = vunpack.c.l.b16 %v233
    %v266 = vunpack.c.l.b16 %v234
    %v267 = vunpack.c.l.b16 %v235
    %v268 = vunpack.c.l.b16 %v236
    %v269 = vunpack.c.l.b16 %v237
    %v270 = vunpack.c.l.b16 %v238
    %v271 = vunpack.c.l.b16 %v239
    %v272 = vunpack.c.l.b16 %v240
    %v273 = vunpack.c.l.b16 %v241
    %v274 = vunpack.c.l.b16 %v242
    %v275 = vunpack.c.l.b16 %v243
    %v276 = vpack.c.b16 %v261, %v260
    %v277 = vpack.c.b16 %v263, %v262
    %v278 = vpack.c.b16 %v265, %v264
    %v279 = vpack.c.b16 %v267, %v266
    %v280 = vpack.c.b16 %v269, %v268
    %v281 = vpack.c.b16 %v271, %v270
    %v282 = vpack.c.b16 %v273, %v272
    %v283 = vpack.c.b16 %v275, %v274
    %292 = vmatprep.subr.bf16.mxu0 0
    %293 = vmatpush1.bf16.msra.mxu0 %v276
    %294 = vmatprep.subr.bf16.mxu0 0
    %295 = vmatpush1.bf16.msra.mxu0 %v277
    %296 = vmatprep.subr.bf16.mxu0 0
    %297 = vmatpush1.bf16.msra.mxu0 %v278
    %298 = vmatprep.subr.bf16.mxu0 0
    %299 = vmatpush1.bf16.msra.mxu0 %v279
    %300 = vmatprep.subr.bf16.mxu0 0
    %301 = vmatpush1.bf16.msra.mxu0 %v280
    %302 = vmatprep.subr.bf16.mxu0 0
    %303 = vmatpush1.bf16.msra.mxu0 %v281
    %304 = vmatprep.subr.bf16.mxu0 0
    %305 = vmatpush1.bf16.msra.mxu0 %v282
    %306 = vmatprep.subr.bf16.mxu0 0
    %307 = vmatpush1.bf16.msra.mxu0 %v283
    %308 = vmatprep.subr.bf16.mxu0 0
    %309 = vmatpush1.bf16.msra.mxu0 0
    %310 = vmatprep.subr.bf16.mxu0 0
    %311 = vmatpush1.bf16.msra.mxu0 0
    %312 = vmatprep.subr.bf16.mxu0 0
    %313 = vmatpush1.bf16.msra.mxu0 0
    %314 = vmatprep.subr.bf16.mxu0 0
    %315 = vmatpush1.bf16.msra.mxu0 0
    %316 = vmatprep.subr.bf16.mxu0 0
    %317 = vmatpush1.bf16.msra.mxu0 0
    %318 = vmatprep.subr.bf16.mxu0 0
    %319 = vmatpush1.bf16.msra.mxu0 0
    %320 = vmatprep.subr.bf16.mxu0 0
    %321 = vmatpush1.bf16.msra.mxu0 0
    %322 = vmatprep.subr.bf16.mxu0 0
    %323 = vmatpush1.bf16.msra.mxu0 0
    %324 = vmatprep.mubr.bf16.mxu0 0
    %325 = vmatmul.mubr.bf16.gmra.mrb[0].mxu0 %v224
    %v326 = vpop.f32.mrb[0].mxu0
    %v327 = vadd.f32 0.0, %v326
    %v328 = vpop.f32.mrb[0].mxu0
    %v329 = vpop.f32.mrb[0].mxu0
    %v330 = vadd.f32 0.0, %v329
    %v331 = vpop.f32.mrb[0].mxu0
    %332 = vmatprep.mubr.bf16.mxu0 0
    %333 = vmatmul.mubr.bf16.gmra.mrb[0].mxu0 %v225
    %v334 = vpop.f32.mrb[0].mxu0
    %v335 = vadd.f32 0.0, %v334
    %v336 = vpop.f32.mrb[0].mxu0
    %v337 = vpop.f32.mrb[0].mxu0
    %v338 = vadd.f32 0.0, %v337
    %v339 = vpop.f32.mrb[0].mxu0
    %340 = vmatprep.mubr.bf16.mxu0 0
    %341 = vmatmul.mubr.bf16.gmra.mrb[0].mxu0 %v226
    %v342 = vpop.f32.mrb[0].mxu0
    %v343 = vadd.f32 0.0, %v342
    %v344 = vpop.f32.mrb[0].mxu0
    %v345 = vpop.f32.mrb[0].mxu0
    %v346 = vadd.f32 0.0, %v345
    %v347 = vpop.f32.mrb[0].mxu0
    %348 = vmatprep.mubr.bf16.mxu0 0
    %349 = vmatmul.mubr.bf16.gmra.mrb[0].mxu0 %v227
    %v350 = vpop.f32.mrb[0].mxu0
    %v351 = vadd.f32 0.0, %v350
    %v352 = vpop.f32.mrb[0].mxu0
    %v353 = vpop.f32.mrb[0].mxu0
    %v354 = vadd.f32 0.0, %v353
    %v355 = vpop.f32.mrb[0].mxu0
    %356 = vdwg.mxu0
    %v357 = vld [vmem:[%s3] sm:$0x1]
    %vm358 = vcmp.le.s32.totalorder %v42, 4
    %vm359 = vcmp.ne.s32.totalorder %v42, 2
    %vm360 = vmand %vm358, %vm359
    %v362 = vlaneseq
    %v363 = vshrl.u32 %v362, 7
    %v364 = vsub.s32 0, %v363
    %v365 = vrot.slane %v357, %v364
    %v367 = vadd.f32 %v327, %v365
    %v368 = vadd.f32 %v330, %v365
    %v369 = vadd.f32 %v335, %v365
    %v370 = vadd.f32 %v338, %v365
    %v371 = vadd.f32 %v343, %v365
    %v372 = vadd.f32 %v346, %v365
    %v373 = vadd.f32 %v351, %v365
    %v374 = vadd.f32 %v354, %v365
    %v375 = vmax.f32 %v367, 0.0
    %v376 = vmax.f32 %v368, 0.0
    %v377 = vmax.f32 %v369, 0.0
    %v378 = vmax.f32 %v370, 0.0
    %v379 = vmax.f32 %v371, 0.0
    %v380 = vmax.f32 %v372, 0.0
    %v381 = vmax.f32 %v373, 0.0
    %v382 = vmax.f32 %v374, 0.0
    %v383 = vsel %vm360, 1, 0
    %vm384 = vcmp.eq.s32.totalorder %v383, 1
    %v385 = vsel %vm384, %v375, 0.0
    %v386 = vsel %vm384, %v376, 0.0
    %v387 = vsel %vm384, %v377, 0.0
    %v388 = vsel %vm384, %v378, 0.0
    %v389 = vsel %vm384, %v379, 0.0
    %v390 = vsel %vm384, %v380, 0.0
    %v391 = vsel %vm384, %v381, 0.0
    %v392 = vsel %vm384, %v382, 0.0
    %393 = vmax.xlane.f32.xlu0 %v385
    %v394 = vpop.xlane.xlu0 %393
    %395 = vmax.xlane.f32.xlu0 %v386
    %v396 = vpop.xlane.xlu0 %395
    %397 = vmax.xlane.f32.xlu0 %v387
    %v398 = vpop.xlane.xlu0 %397
    %399 = vmax.xlane.f32.xlu0 %v388
    %v400 = vpop.xlane.xlu0 %399
    %401 = vmax.xlane.f32.xlu0 %v389
    %v402 = vpop.xlane.xlu0 %401
    %403 = vmax.xlane.f32.xlu0 %v390
    %v404 = vpop.xlane.xlu0 %403
    %405 = vmax.xlane.f32.xlu0 %v391
    %v406 = vpop.xlane.xlu0 %405
    %407 = vmax.xlane.f32.xlu0 %v392
    %v408 = vpop.xlane.xlu0 %407
    %v409 = vmul.f32 %v327, %v394
    %v410 = vmul.f32 %v330, %v396
    %v411 = vmul.f32 %v335, %v398
    %v412 = vmul.f32 %v338, %v400
    %v413 = vmul.f32 %v343, %v402
    %v414 = vmul.f32 %v346, %v404
    %v415 = vmul.f32 %v351, %v406
    %v416 = vmul.f32 %v354, %v408
    %v417 = vsel %vm384, %v409, %v327
    %v418 = vsel %vm384, %v410, %v330
    %v419 = vsel %vm384, %v411, %v335
    %v420 = vsel %vm384, %v412, %v338
    %v421 = vsel %vm384, %v413, %v343
    %v422 = vsel %vm384, %v414, %v346
    %v423 = vsel %vm384, %v415, %v351
    %v424 = vsel %vm384, %v416, %v354
    %v425 = vrot.slane %v417, 4
    %v426 = vadd.f32 %v417, %v425
    %v427 = vrot.slane %v426, 2
    %v428 = vadd.f32 %v426, %v427
    %v429 = vrot.slane %v428, 1
    %v430 = vadd.f32 %v428, %v429
    %v431 = vrot.slane %v418, 4
    %v432 = vadd.f32 %v418, %v431
    %v433 = vrot.slane %v432, 2
    %v434 = vadd.f32 %v432, %v433
    %v435 = vrot.slane %v434, 1
    %v436 = vadd.f32 %v434, %v435
    %v437 = vrot.slane %v419, 4
    %v438 = vadd.f32 %v419, %v437
    %v439 = vrot.slane %v438, 2
    %v440 = vadd.f32 %v438, %v439
    %v441 = vrot.slane %v440, 1
    %v442 = vadd.f32 %v440, %v441
    %v443 = vrot.slane %v420, 4
    %v444 = vadd.f32 %v420, %v443
    %v445 = vrot.slane %v444, 2
    %v446 = vadd.f32 %v444, %v445
    %v447 = vrot.slane %v446, 1
    %v448 = vadd.f32 %v446, %v447
    %v449 = vrot.slane %v421, 4
    %v450 = vadd.f32 %v421, %v449
    %v451 = vrot.slane %v450, 2
    %v452 = vadd.f32 %v450, %v451
    %v453 = vrot.slane %v452, 1
    %v454 = vadd.f32 %v452, %v453
    %v455 = vrot.slane %v422, 4
    %v456 = vadd.f32 %v422, %v455
    %v457 = vrot.slane %v456, 2
    %v458 = vadd.f32 %v456, %v457
    %v459 = vrot.slane %v458, 1
    %v460 = vadd.f32 %v458, %v459
    %v461 = vrot.slane %v423, 4
    %v462 = vadd.f32 %v423, %v461
    %v463 = vrot.slane %v462, 2
    %v464 = vadd.f32 %v462, %v463
    %v465 = vrot.slane %v464, 1
    %v466 = vadd.f32 %v464, %v465
    %v467 = vrot.slane %v424, 4
    %v468 = vadd.f32 %v424, %v467
    %v469 = vrot.slane %v468, 2
    %v470 = vadd.f32 %v468, %v469
    %v471 = vrot.slane %v470, 1
    %v472 = vadd.f32 %v470, %v471
    %v473 = vmul.f32 %v430, 0.125
    %v474 = vmul.f32 %v436, 0.125
    %v475 = vmul.f32 %v442, 0.125
    %v476 = vmul.f32 %v448, 0.125
    %v477 = vmul.f32 %v454, 0.125
    %v478 = vmul.f32 %v460, 0.125
    %v479 = vmul.f32 %v466, 0.125
    %v480 = vmul.f32 %v472, 0.125
    %vm481 = vcmp.ge.s32.totalorder %v42, 5
    %vm482 = vcmp.lt.s32.totalorder %v42, 10
    %vm483 = vmand %vm481, %vm482
    %v484 = vadd.f32 %v473, %v365
    %v485 = vadd.f32 %v474, %v365
    %v486 = vadd.f32 %v475, %v365
    %v487 = vadd.f32 %v476, %v365
    %v488 = vadd.f32 %v477, %v365
    %v489 = vadd.f32 %v478, %v365
    %v490 = vadd.f32 %v479, %v365
    %v491 = vadd.f32 %v480, %v365
    %v492 = vmax.f32 %v484, 0.0
    %v493 = vmax.f32 %v485, 0.0
    %v494 = vmax.f32 %v486, 0.0
    %v495 = vmax.f32 %v487, 0.0
    %v496 = vmax.f32 %v488, 0.0
    %v497 = vmax.f32 %v489, 0.0
    %v498 = vmax.f32 %v490, 0.0
    %v499 = vmax.f32 %v491, 0.0
    %v508 = vrot.slane %v493, 7
    %vm509 = vcmask 1041409
    %v510 = vsel %vm509, %v508, %v492
    %v511 = vrot.slane %v494, 6
    %vm512 = vcmask 1042434
    %v513 = vsel %vm512, %v511, %v510
    %v514 = vrot.slane %v495, 5
    %vm515 = vcmask 1043459
    %v516 = vsel %vm515, %v514, %v513
    %v517 = vrot.slane %v496, 4
    %vm518 = vcmask 1044484
    %v519 = vsel %vm518, %v517, %v516
    %v520 = vrot.slane %v497, 3
    %vm521 = vcmask 1045509
    %v522 = vsel %vm521, %v520, %v519
    %v523 = vrot.slane %v498, 2
    %vm524 = vcmask 1046534
    %v525 = vsel %vm524, %v523, %v522
    %v526 = vrot.slane %v499, 1
    %vm527 = vcmask 1047559
    %v528 = vsel %vm527, %v526, %v525
    %v530 = vsel %vm384, %v528, -1e+30
    %531 = vmax.xlane.f32.xlu0 %v530
    %v532 = vpop.xlane.xlu0 %531
    %v533 = vsub.f32 %v530, %v532
    %v534 = vmul.f32 %v533, 1.442695
    %v535 = vpow.pop %v534
    %v536 = vsel %vm384, %v535, 0.0
    %537 = vadd.xlane.f32.xlu0 %v536
    %v538 = vpop.xlane.xlu0 %537
    %v539 = vrcp.pop %v538
    %v540 = vmul.f32 %v536, %v539
    %v541 = vsel %vm483, 1, 0
    %vm542 = vcmp.eq.s32.totalorder %v541, 1
    %v551 = vrot.slane %v485, 7
    %v552 = vsel %vm509, %v551, %v484
    %v553 = vrot.slane %v486, 6
    %v554 = vsel %vm512, %v553, %v552
    %v555 = vrot.slane %v487, 5
    %v556 = vsel %vm515, %v555, %v554
    %v557 = vrot.slane %v488, 4
    %v558 = vsel %vm518, %v557, %v556
    %v559 = vrot.slane %v489, 3
    %v560 = vsel %vm521, %v559, %v558
    %v561 = vrot.slane %v490, 2
    %v562 = vsel %vm524, %v561, %v560
    %v563 = vrot.slane %v491, 1
    %v564 = vsel %vm527, %v563, %v562
    %v566 = vsel %vm542, %v564, -1e+30
    %567 = vmax.xlane.f32.xlu0 %v566
    %v568 = vpop.xlane.xlu0 %567
    %v569 = vsub.f32 %v566, %v568
    %v570 = vmul.f32 %v569, 1.442695
    %v571 = vpow.pop %v570
    %v572 = vsel %vm542, %v571, 0.0
    %573 = vadd.xlane.f32.xlu0 %v572
    %v574 = vpop.xlane.xlu0 %573
    %v575 = vrcp.pop %v574
    %v576 = vmul.f32 %v572, %v575
    %vm577 = vcmp.gt.f32.partialorder %v576, 0.0
    %v578 = vmax.f32 %v576, 1e-37
    %v579 = vlog2.pop %v578
    %v580 = vmul.f32 %v579, 0.6931472
    %v581 = vmul.f32 %v576, %v580
    %v582 = vsel %vm577, %v581, 0.0
    %583 = vadd.xlane.f32.xlu0 %v582
    %v584 = vpop.xlane.xlu0 %583
    %v585 = vmul.f32 %v584, -0.6213349
    %vm586 = vcmp.ge.f32.partialorder %v585, 0.1
    %v587 = vsub.f32 %v585, 0.1
    %v588 = vmul.f32 %v587, 1.1111112
    %v589 = vsel %vm586, %v588, 0.0
    %vm590 = vcmp.eq.s32.totalorder %v42, 2
    %v591 = vsub.f32 1.0, %v589
    %v592 = vmul.f32 %v540, %v591
    %v593 = vsel %vm590, 1, 0
    %vm594 = vcmp.eq.s32.totalorder %v593, 1
    %v595 = vsel %vm594, %v589, %v592
    %596 = vst [vmem:[#allocation5] sm:$0xff] %v595
    // Predicated region
    $region22: #{tpu_custom_call.1} parent=1 // pred_check
      _
    $region23: #{tpu_custom_call.1} parent=1 // pred_check_branch
      %598 = sbr.rel (0) target = $region25
    $region24: #{tpu_custom_call.1} parent=1 // pred_region
      %s600 = ssub.s32 128, 128
      %601 = vsyncadd [#allocation4], %s600
      %s603 = sshll.u32 [#allocation5], 4
      %s604 = int_to_ptr.vmem [resolvable:$true] %s603
      %606 = dma.vmem_to_hbm [thread:$0]  %s604, 128, %s4, [#allocation4]
    $region25: #{tpu_custom_call.1} parent=1 // pred_fallthru
      _
    // Predicated region
    $region26: #{tpu_custom_call.1} parent=1 // pred_check
      _
    $region27: #{tpu_custom_call.1} parent=1 // pred_check_branch
      %608 = sbr.rel (0) target = $region29
    $region28: #{tpu_custom_call.1} parent=1 // pred_region
      %609 = dma.done [#allocation4], 128
    $region29: #{tpu_custom_call.1} parent=1 // pred_fallthru
      _
    %610 = vsyncpa [#allocation3], 1
    %611 = vsyncpa [#allocation4], 1

</llo_original>
